<compile_context>
chip_gen: v6e
topology: v6e:2x2x1
jax: 0.10.0
libtpu: 0.0.40
codegen_flags: <defaults>
</compile_context>

<pallas_src>
import functools

import jax
import jax.numpy as jnp
from jax.experimental import pallas as pl
from jax.experimental.pallas import tpu as pltpu


def _round_up(n, m):
    return -(-n // m) * m


def _mlp3_kernel(x_ref, w1_ref, b1_ref, w2_ref, b2_ref, w3_ref, b3_ref, o_ref,
                 *, compute_dtype):
    # Three MXU matmuls with f32 accumulation; bias adds ride in spare VPU slots.
    x = x_ref[...].astype(compute_dtype)
    h1 = jnp.dot(x, w1_ref[...], preferred_element_type=jnp.float32) + b1_ref[...]
    h2 = jnp.dot(h1.astype(compute_dtype), w2_ref[...],
                 preferred_element_type=jnp.float32) + b2_ref[...]
    h3 = jnp.dot(h2.astype(compute_dtype), w3_ref[...],
                 preferred_element_type=jnp.float32) + b3_ref[...]
    o_ref[...] = h3.astype(o_ref.dtype)


@functools.partial(jax.jit, static_argnames=("block_b", "use_bf16"))
def text_concatenate_forward(x, params, block_b=256, use_bf16=True):
    """Fused forward pass of TEXT_Concatenate.

    x: (B, input_size) float32
    params: dict with w1 (in,256), b1 (1,256), w2 (256,256), b2 (1,256),
            w3 (256,out), b3 (1,out)
    """
    w1, b1, w2, b2, w3, b3 = (params["w1"], params["b1"], params["w2"],
                              params["b2"], params["w3"], params["b3"])
    B, d_in = x.shape
    hidden = w1.shape[1]
    d_out = w3.shape[1]

    compute_dtype = jnp.bfloat16 if use_bf16 else jnp.float32

    # --- pad batch so any B works with a large MXU-friendly tile ----------------
    grid_b = pl.cdiv(B, block_b)
    B_pad = grid_b * block_b
    if B_pad != B:
        x = jnp.pad(x, ((0, B_pad - B), (0, 0)))

    # --- pad output features to a 128-lane multiple (lane-dense stores) ---------
    d_out_pad = _round_up(d_out, 128)
    if d_out_pad != d_out:
        w3 = jnp.pad(w3, ((0, 0), (0, d_out_pad - d_out)))
        b3 = jnp.pad(b3, ((0, 0), (0, d_out_pad - d_out)))

    # Weights as bf16 (halves HBM traffic + VMEM); biases stay f32 (added post-acc).
    w1c = w1.astype(compute_dtype)
    w2c = w2.astype(compute_dtype)
    w3c = w3.astype(compute_dtype)

    grid = (grid_b,)

    # Batch streams over the grid; weights/biases use constant index_maps, so they
    # stay resident in VMEM across grid steps (no redundant DMA).
    in_specs = [
        pl.BlockSpec((block_b, d_in), lambda i: (i, 0)),        # x tile
        pl.BlockSpec((d_in, hidden), lambda i: (0, 0)),         # W1
        pl.BlockSpec((1, hidden), lambda i: (0, 0)),            # b1
        pl.BlockSpec((hidden, hidden), lambda i: (0, 0)),       # W2
        pl.BlockSpec((1, hidden), lambda i: (0, 0)),            # b2
        pl.BlockSpec((hidden, d_out_pad), lambda i: (0, 0)),    # W3 (padded)
        pl.BlockSpec((1, d_out_pad), lambda i: (0, 0)),         # b3 (padded)
    ]
    out_specs = pl.BlockSpec((block_b, d_out_pad), lambda i: (i, 0))

    itemsize = jnp.dtype(compute_dtype).itemsize
    flops = 2 * B_pad * (d_in * hidden + hidden * hidden + hidden * d_out_pad)
    bytes_accessed = (
        B_pad * d_in * 4                                        # x (f32 in HBM)
        + (d_in * hidden + hidden * hidden + hidden * d_out_pad) * itemsize
        + (2 * hidden + d_out_pad) * 4                          # biases
        + B_pad * d_out_pad * 4                                 # output
    )
    cost = pl.CostEstimate(flops=flops, transcendentals=0,
                           bytes_accessed=bytes_accessed)

    out_pad = pl.pallas_call(
        functools.partial(_mlp3_kernel, compute_dtype=compute_dtype),
        out_shape=jax.ShapeDtypeStruct((B_pad, d_out_pad), jnp.float32),
        grid_spec=pltpu.PrefetchScalarGridSpec(
            num_scalar_prefetch=0,
            grid=grid,
            in_specs=in_specs,
            out_specs=out_specs,
        ),
        compiler_params=pltpu.CompilerParams(
            dimension_semantics=("parallel",)),
        cost_estimate=cost,
    )(x, w1c, b1, w2c, b2, w3c, b3)

    return out_pad[:B, :d_out]


def init_params(key, input_size, output_size, hidden=256):
    """Deterministic PyTorch-style (uniform +/- 1/sqrt(fan_in)) init."""
    ks = jax.random.split(key, 6)

    def lin(kw, kb, fan_in, fan_out):
        bound = 1.0 / jnp.sqrt(fan_in)
        # stored as (in, out) so kernel does x @ W
        w = jax.random.uniform(kw, (fan_in, fan_out), jnp.float32, -bound, bound)
        b = jax.random.uniform(kb, (1, fan_out), jnp.float32, -bound, bound)
        return w, b

    w1, b1 = lin(ks[0], ks[1], input_size, hidden)
    w2, b2 = lin(ks[2], ks[3], hidden, hidden)
    w3, b3 = lin(ks[4], ks[5], hidden, output_size)
    return {"w1": w1, "b1": b1, "w2": w2, "b2": b2, "w3": w3, "b3": b3}


def reference_forward(x, p):
    h1 = x @ p["w1"] + p["b1"]
    h2 = h1 @ p["w2"] + p["b2"]
    return h2 @ p["w3"] + p["b3"]


if __name__ == "__main__":
    key = jax.random.PRNGKey(0)
    k_x, k_p = jax.random.split(key)

    # Small demo shapes; batch deliberately NOT a multiple of the tile to exercise
    # the ragged-batch padding path, output width 64 exercises lane padding.
    batch = 48
    input_size = 32
    output_size = 64

    x = jax.random.normal(k_x, (batch, input_size), jnp.float32)
    params = init_params(k_p, input_size, output_size)

    # bf16-operand path (default): compare against f32 reference with a tolerance
    # appropriate for bf16 inputs + f32 accumulation over K<=256.
    out = text_concatenate_forward(x, params, block_b=128, use_bf16=True)
    out = jax.block_until_ready(out)
    ref = reference_forward(x, params)
    assert out.shape == (batch, output_size), out.shape
    assert jnp.allclose(out, ref, atol=3e-2, rtol=3e-2), "bf16 path mismatch vs reference"

    # Full-precision path: tight tolerance.
    out_f32 = text_concatenate_forward(x, params, block_b=128, use_bf16=False)
    out_f32 = jax.block_until_ready(out_f32)
    assert jnp.allclose(out_f32, ref, atol=1e-4, rtol=1e-4), "f32 path mismatch vs reference"

    print("KERNEL_OK")
</pallas_src>

<mosaic_0001>
module attributes {stable_mosaic.version = 11 : i64} {
  func.func @_mlp3_kernel(%arg0: i32, %arg1: memref<128x32xf32, #tpu.memory_space<vmem>>, %arg2: memref<32x256xbf16, #tpu.memory_space<vmem>>, %arg3: memref<1x256xf32, #tpu.memory_space<vmem>>, %arg4: memref<256x256xbf16, #tpu.memory_space<vmem>>, %arg5: memref<1x256xf32, #tpu.memory_space<vmem>>, %arg6: memref<256x128xbf16, #tpu.memory_space<vmem>>, %arg7: memref<1x128xf32, #tpu.memory_space<vmem>>, %arg8: memref<128x128xf32, #tpu.memory_space<vmem>>) attributes {dimension_semantics = [#tpu.dimension_semantics<parallel>], iteration_bounds = array<i64: 1>, scalar_prefetch = 0 : i64, scratch_operands = 0 : i64, tpu.core_type = #tpu.core_type<tc>, window_params = [{transform_indices = @transform_0, window_bounds = array<i64: 128, 32>}, {pipeline_mode = #tpu.pipeline_mode<synchronous>, transform_indices = @transform_1, window_bounds = array<i64: 32, 256>}, {pipeline_mode = #tpu.pipeline_mode<synchronous>, transform_indices = @transform_2, window_bounds = array<i64: 1, 256>}, {pipeline_mode = #tpu.pipeline_mode<synchronous>, transform_indices = @transform_3, window_bounds = array<i64: 256, 256>}, {pipeline_mode = #tpu.pipeline_mode<synchronous>, transform_indices = @transform_4, window_bounds = array<i64: 1, 256>}, {pipeline_mode = #tpu.pipeline_mode<synchronous>, transform_indices = @transform_5, window_bounds = array<i64: 256, 128>}, {pipeline_mode = #tpu.pipeline_mode<synchronous>, transform_indices = @transform_6, window_bounds = array<i64: 1, 128>}, {transform_indices = @transform_7, window_bounds = array<i64: 128, 128>}]} {
    %c0 = arith.constant 0 : index
    %c0_0 = arith.constant 0 : index
    %0 = vector.load %arg1[%c0, %c0_0] : memref<128x32xf32, #tpu.memory_space<vmem>>, vector<128x32xf32>
    %1 = arith.truncf %0 : vector<128x32xf32> to vector<128x32xbf16>
    %c0_1 = arith.constant 0 : index
    %c0_2 = arith.constant 0 : index
    %2 = vector.load %arg2[%c0_1, %c0_2] : memref<32x256xbf16, #tpu.memory_space<vmem>>, vector<32x256xbf16>
    %cst = arith.constant dense<0.000000e+00> : vector<128x256xf32>
    %3 = tpu.matmul %1, %2, %cst {dimension_numbers = #tpu.dot_dimension_numbers<[1], [0], [0], [1], [0, 0, 1, 1], [], []>} : vector<128x32xbf16>, vector<32x256xbf16>, vector<128x256xf32> -> vector<128x256xf32>
    %c0_3 = arith.constant 0 : index
    %c0_4 = arith.constant 0 : index
    %4 = vector.load %arg3[%c0_3, %c0_4] : memref<1x256xf32, #tpu.memory_space<vmem>>, vector<1x256xf32>
    %5 = vector.broadcast %4 : vector<1x256xf32> to vector<128x256xf32>
    %6 = arith.addf %3, %5 : vector<128x256xf32>
    %7 = arith.truncf %6 : vector<128x256xf32> to vector<128x256xbf16>
    %c0_5 = arith.constant 0 : index
    %c0_6 = arith.constant 0 : index
    %8 = vector.load %arg4[%c0_5, %c0_6] : memref<256x256xbf16, #tpu.memory_space<vmem>>, vector<256x256xbf16>
    %cst_7 = arith.constant dense<0.000000e+00> : vector<128x256xf32>
    %9 = tpu.matmul %7, %8, %cst_7 {dimension_numbers = #tpu.dot_dimension_numbers<[1], [0], [0], [1], [0, 0, 1, 1], [], []>} : vector<128x256xbf16>, vector<256x256xbf16>, vector<128x256xf32> -> vector<128x256xf32>
    %c0_8 = arith.constant 0 : index
    %c0_9 = arith.constant 0 : index
    %10 = vector.load %arg5[%c0_8, %c0_9] : memref<1x256xf32, #tpu.memory_space<vmem>>, vector<1x256xf32>
    %11 = vector.broadcast %10 : vector<1x256xf32> to vector<128x256xf32>
    %12 = arith.addf %9, %11 : vector<128x256xf32>
    %13 = arith.truncf %12 : vector<128x256xf32> to vector<128x256xbf16>
    %c0_10 = arith.constant 0 : index
    %c0_11 = arith.constant 0 : index
    %14 = vector.load %arg6[%c0_10, %c0_11] : memref<256x128xbf16, #tpu.memory_space<vmem>>, vector<256x128xbf16>
    %cst_12 = arith.constant dense<0.000000e+00> : vector<128x128xf32>
    %15 = tpu.matmul %13, %14, %cst_12 {dimension_numbers = #tpu.dot_dimension_numbers<[1], [0], [0], [1], [0, 0, 1, 1], [], []>} : vector<128x256xbf16>, vector<256x128xbf16>, vector<128x128xf32> -> vector<128x128xf32>
    %c0_13 = arith.constant 0 : index
    %c0_14 = arith.constant 0 : index
    %16 = vector.load %arg7[%c0_13, %c0_14] : memref<1x128xf32, #tpu.memory_space<vmem>>, vector<1x128xf32>
    %17 = vector.broadcast %16 : vector<1x128xf32> to vector<128x128xf32>
    %18 = arith.addf %15, %17 : vector<128x128xf32>
    %c0_15 = arith.constant 0 : index
    %c0_16 = arith.constant 0 : index
    %19 = vector.load %arg8[%c0_15, %c0_16] : memref<128x128xf32, #tpu.memory_space<vmem>>, vector<128x128xf32>
    tpu.vector_store %arg8[%c0_15, %c0_16], %18 {strides = array<i32>} : memref<128x128xf32, #tpu.memory_space<vmem>>, vector<128x128xf32>,
    return
  }
  func.func @transform_0(%arg0: i32) -> (i32, i32) {
    %c0_i32 = arith.constant 0 : i32
    %c0_i32_0 = arith.constant 0 : i32
    return %arg0, %c0_i32 : i32, i32
  }
  func.func @transform_1(%arg0: i32) -> (i32, i32) {
    %c0_i32 = arith.constant 0 : i32
    %c0_i32_0 = arith.constant 0 : i32
    %c0_i32_1 = arith.constant 0 : i32
    return %c0_i32, %c0_i32_0 : i32, i32
  }
  func.func @transform_2(%arg0: i32) -> (i32, i32) {
    %c0_i32 = arith.constant 0 : i32
    %c0_i32_0 = arith.constant 0 : i32
    %c0_i32_1 = arith.constant 0 : i32
    return %c0_i32, %c0_i32_0 : i32, i32
  }
  func.func @transform_3(%arg0: i32) -> (i32, i32) {
    %c0_i32 = arith.constant 0 : i32
    %c0_i32_0 = arith.constant 0 : i32
    %c0_i32_1 = arith.constant 0 : i32
    return %c0_i32, %c0_i32_0 : i32, i32
  }
  func.func @transform_4(%arg0: i32) -> (i32, i32) {
    %c0_i32 = arith.constant 0 : i32
    %c0_i32_0 = arith.constant 0 : i32
    %c0_i32_1 = arith.constant 0 : i32
    return %c0_i32, %c0_i32_0 : i32, i32
  }
  func.func @transform_5(%arg0: i32) -> (i32, i32) {
    %c0_i32 = arith.constant 0 : i32
    %c0_i32_0 = arith.constant 0 : i32
    %c0_i32_1 = arith.constant 0 : i32
    return %c0_i32, %c0_i32_0 : i32, i32
  }
  func.func @transform_6(%arg0: i32) -> (i32, i32) {
    %c0_i32 = arith.constant 0 : i32
    %c0_i32_0 = arith.constant 0 : i32
    %c0_i32_1 = arith.constant 0 : i32
    return %c0_i32, %c0_i32_0 : i32, i32
  }
  func.func @transform_7(%arg0: i32) -> (i32, i32) {
    %c0_i32 = arith.constant 0 : i32
    %c0_i32_0 = arith.constant 0 : i32
    return %arg0, %c0_i32 : i32, i32
  }
}

</mosaic_0001>

<llo_original>
// kernel: text_concatenate_forward.1
$region0: #{text_concatenate_forward.1}
  #allocation0 [shape = 'u32[]', space=smem, size = 0x4, offset = 0x4, fixed_abs, tag = 'smem constant byte address 0x4 - core index']
  #allocation1 [shape = 'u32[144,128]{1,0:T(1,128)}', space=vmem, size = 0x12000, scoped, tag = 'internal scratch']
  %s0 = inlined_call_operand.vmem [shape: f32[128,32], index: 0, kind: input, shape index: {}]
  %s1 = inlined_call_operand.vmem [shape: bf16[32,256], index: 1, kind: input, shape index: {}]
  %s2 = inlined_call_operand.vmem [shape: f32[1,256], index: 2, kind: input, shape index: {}]
  %s3 = inlined_call_operand.vmem [shape: bf16[256,256], index: 3, kind: input, shape index: {}]
  %s4 = inlined_call_operand.vmem [shape: f32[1,256], index: 4, kind: input, shape index: {}]
  %s5 = inlined_call_operand.vmem [shape: bf16[256,128], index: 5, kind: input, shape index: {}]
  %s6 = inlined_call_operand.vmem [shape: f32[1,128], index: 6, kind: input, shape index: {}]
  %s7 = inlined_call_operand.vmem [shape: f32[128,128], index: 7, kind: output, shape index: {}]
  %s8 = sld [smem:[#allocation0]]
  $region38: #{text_concatenate_forward.1} parent=0
    _
  %s10 = ssub.s32 1, %s8
  %s11 = scalar_select 0, %s10, %s8
  // Predicated region
  $region2: #{text_concatenate_forward.1} parent=0 // pred_check
    _
  $region3: #{text_concatenate_forward.1} parent=0 // pred_check_branch
    %13 = sbr.rel (0) target = $region5
  $region4: #{text_concatenate_forward.1} parent=0 // pred_region
    _
  $region5: #{text_concatenate_forward.1} parent=0 // pred_fallthru
    _
  // Predicated region
  $region6: #{text_concatenate_forward.1} parent=0 // pred_check
    _
  $region7: #{text_concatenate_forward.1} parent=0 // pred_check_branch
    %15 = sbr.rel (0) target = $region9
  $region8: #{text_concatenate_forward.1} parent=0 // pred_region
    _
  $region9: #{text_concatenate_forward.1} parent=0 // pred_fallthru
    _
  // Predicated region
  $region10: #{text_concatenate_forward.1} parent=0 // pred_check
    _
  $region11: #{text_concatenate_forward.1} parent=0 // pred_check_branch
    %17 = sbr.rel (0) target = $region13
  $region12: #{text_concatenate_forward.1} parent=0 // pred_region
    _
  $region13: #{text_concatenate_forward.1} parent=0 // pred_fallthru
    _
  // Predicated region
  $region14: #{text_concatenate_forward.1} parent=0 // pred_check
    _
  $region15: #{text_concatenate_forward.1} parent=0 // pred_check_branch
    %19 = sbr.rel (0) target = $region17
  $region16: #{text_concatenate_forward.1} parent=0 // pred_region
    _
  $region17: #{text_concatenate_forward.1} parent=0 // pred_fallthru
    _
  // Predicated region
  $region18: #{text_concatenate_forward.1} parent=0 // pred_check
    _
  $region19: #{text_concatenate_forward.1} parent=0 // pred_check_branch
    %21 = sbr.rel (0) target = $region21
  $region20: #{text_concatenate_forward.1} parent=0 // pred_region
    _
  $region21: #{text_concatenate_forward.1} parent=0 // pred_fallthru
    _
  // Predicated region
  $region22: #{text_concatenate_forward.1} parent=0 // pred_check
    _
  $region23: #{text_concatenate_forward.1} parent=0 // pred_check_branch
    %23 = sbr.rel (0) target = $region25
  $region24: #{text_concatenate_forward.1} parent=0 // pred_region
    _
  $region25: #{text_concatenate_forward.1} parent=0 // pred_fallthru
    _
  // Predicated region
  $region26: #{text_concatenate_forward.1} parent=0 // pred_check
    _
  $region27: #{text_concatenate_forward.1} parent=0 // pred_check_branch
    %25 = sbr.rel (0) target = $region29
  $region28: #{text_concatenate_forward.1} parent=0 // pred_region
    _
  $region29: #{text_concatenate_forward.1} parent=0 // pred_fallthru
    _
  %v27 = vld [vmem:[%s0] sm:$0xff]
  %v28 = vld [vmem:[%s0 + $0x8] sm:$0xff]
  %v29 = vld [vmem:[%s0 + $0x10] sm:$0xff]
  %v30 = vld [vmem:[%s0 + $0x18] sm:$0xff]
  %v31 = vld [vmem:[%s0 + $0x20] sm:$0xff]
  %v32 = vld [vmem:[%s0 + $0x28] sm:$0xff]
  %v33 = vld [vmem:[%s0 + $0x30] sm:$0xff]
  %v34 = vld [vmem:[%s0 + $0x38] sm:$0xff]
  %v35 = vld [vmem:[%s0 + $0x40] sm:$0xff]
  %v36 = vld [vmem:[%s0 + $0x48] sm:$0xff]
  %v37 = vld [vmem:[%s0 + $0x50] sm:$0xff]
  %v38 = vld [vmem:[%s0 + $0x58] sm:$0xff]
  %v39 = vld [vmem:[%s0 + $0x60] sm:$0xff]
  %v40 = vld [vmem:[%s0 + $0x68] sm:$0xff]
  %v41 = vld [vmem:[%s0 + $0x70] sm:$0xff]
  %v42 = vld [vmem:[%s0 + $0x78] sm:$0xff]
  %v43 = vpack.c.bf16 %v28, %v27
  %v44 = vpack.c.bf16 %v30, %v29
  %v45 = vpack.c.bf16 %v32, %v31
  %v46 = vpack.c.bf16 %v34, %v33
  %v47 = vpack.c.bf16 %v36, %v35
  %v48 = vpack.c.bf16 %v38, %v37
  %v49 = vpack.c.bf16 %v40, %v39
  %v50 = vpack.c.bf16 %v42, %v41
  %v51 = vld [vmem:[%s1] sm:$0xff]
  %v52 = vld [vmem:[%s1 + $0x8] sm:$0xff]
  %v53 = vld [vmem:[%s1 + $0x10] sm:$0xff]
  %v54 = vld [vmem:[%s1 + $0x18] sm:$0xff]
  %v55 = vld [vmem:[%s2] sm:$0x3]
  %v57 = vlaneseq
  %v58 = vshrl.u32 %v57, 7
  %v59 = vsub.s32 0, %v58
  %v60 = vrot.slane %v55, %v59
  %v61 = vlaneseq
  %v62 = vshrl.u32 %v61, 7
  %v63 = vsub.s32 1, %v62
  %v64 = vrot.slane %v55, %v63
  %v71 = vunpack.c.l.b16 %v51
  %v72 = vunpack.c.h.b16 %v51
  %v73 = vunpack.c.l.b16 %v52
  %v74 = vunpack.c.h.b16 %v52
  %v75 = vunpack.c.l.b16 %v53
  %v76 = vunpack.c.h.b16 %v53
  %v77 = vunpack.c.l.b16 %v54
  %v78 = vunpack.c.h.b16 %v54
  %v79 = vpack.c.b16 %v73, %v71
  %v80 = vpack.c.b16 %v74, %v72
  %v81 = vpack.c.b16 %v77, %v75
  %v82 = vpack.c.b16 %v78, %v76
  %vm87 = vcmask 261120
  %v89 = vsel %vm87, %v43, 0
  %v92 = vsel %vm87, %v44, 0
  %v95 = vsel %vm87, %v45, 0
  %v98 = vsel %vm87, %v46, 0
  %v101 = vsel %vm87, %v47, 0
  %v104 = vsel %vm87, %v48, 0
  %v107 = vsel %vm87, %v49, 0
  %v110 = vsel %vm87, %v50, 0
  %112 = vmatprep.subr.bf16.mxu0 0
  %113 = vmatpush1.bf16.msra.mxu0 0
  %114 = vmatprep.subr.bf16.mxu0 0
  %115 = vmatpush1.bf16.msra.mxu0 0
  %116 = vmatprep.subr.bf16.mxu0 0
  %117 = vmatpush1.bf16.msra.mxu0 0
  %118 = vmatprep.subr.bf16.mxu0 0
  %119 = vmatpush1.bf16.msra.mxu0 0
  %120 = vmatprep.subr.bf16.mxu0 0
  %121 = vmatpush1.bf16.msra.mxu0 0
  %122 = vmatprep.subr.bf16.mxu0 0
  %123 = vmatpush1.bf16.msra.mxu0 0
  %124 = vmatprep.subr.bf16.mxu0 %v82
  %125 = vmatpush1.bf16.msra.mxu0 %v81
  %126 = vmatprep.subr.bf16.mxu0 %v80
  %127 = vmatpush1.bf16.msra.mxu0 %v79
  %128 = vmatprep.subr.bf16.mxu0 0
  %129 = vmatpush2.bf16.msra.mxu0 0
  %130 = vmatprep.subr.bf16.mxu0 0
  %131 = vmatpush2.bf16.msra.mxu0 0
  %132 = vmatprep.subr.bf16.mxu0 0
  %133 = vmatpush2.bf16.msra.mxu0 0
  %134 = vmatprep.subr.bf16.mxu0 0
  %135 = vmatpush2.bf16.msra.mxu0 0
  %136 = vmatprep.subr.bf16.mxu0 0
  %137 = vmatpush2.bf16.msra.mxu0 0
  %138 = vmatprep.subr.bf16.mxu0 0
  %139 = vmatpush2.bf16.msra.mxu0 0
  %140 = vmatprep.subr.bf16.mxu0 0
  %141 = vmatpush2.bf16.msra.mxu0 0
  %142 = vmatprep.subr.bf16.mxu0 0
  %143 = vmatpush2.bf16.msra.mxu0 0
  %144 = vmatprep.mubr.bf16.mxu0 0
  %145 = vmatmul.mubr.bf16.gmra.mxu0 %v89
  %v146 = vpop.f32.mrf.mxu0
  %v147 = vadd.f32 %v60, %v146
  %v148 = vpop.f32.mrf.mxu0
  %v149 = vadd.f32 %v64, %v148
  %v150 = vpop.f32.mrf.mxu0
  %v151 = vadd.f32 %v60, %v150
  %v152 = vpop.f32.mrf.mxu0
  %v153 = vadd.f32 %v64, %v152
  %154 = vmatprep.mubr.bf16.mxu0 0
  %155 = vmatmul.mubr.bf16.gmra.mxu0 %v92
  %v156 = vpop.f32.mrf.mxu0
  %v157 = vadd.f32 %v60, %v156
  %v158 = vpop.f32.mrf.mxu0
  %v159 = vadd.f32 %v64, %v158
  %v160 = vpop.f32.mrf.mxu0
  %v161 = vadd.f32 %v60, %v160
  %v162 = vpop.f32.mrf.mxu0
  %v163 = vadd.f32 %v64, %v162
  %164 = vmatprep.mubr.bf16.mxu0 0
  %165 = vmatmul.mubr.bf16.gmra.mxu0 %v95
  %v166 = vpop.f32.mrf.mxu0
  %v167 = vadd.f32 %v60, %v166
  %v168 = vpop.f32.mrf.mxu0
  %v169 = vadd.f32 %v64, %v168
  %v170 = vpop.f32.mrf.mxu0
  %v171 = vadd.f32 %v60, %v170
  %v172 = vpop.f32.mrf.mxu0
  %v173 = vadd.f32 %v64, %v172
  %174 = vmatprep.mubr.bf16.mxu0 0
  %175 = vmatmul.mubr.bf16.gmra.mxu0 %v98
  %v176 = vpop.f32.mrf.mxu0
  %v177 = vadd.f32 %v60, %v176
  %v178 = vpop.f32.mrf.mxu0
  %v179 = vadd.f32 %v64, %v178
  %v180 = vpop.f32.mrf.mxu0
  %v181 = vadd.f32 %v60, %v180
  %v182 = vpop.f32.mrf.mxu0
  %v183 = vadd.f32 %v64, %v182
  %184 = vmatprep.mubr.bf16.mxu0 0
  %185 = vmatmul.mubr.bf16.gmra.mxu0 %v101
  %v186 = vpop.f32.mrf.mxu0
  %v187 = vadd.f32 %v60, %v186
  %v188 = vpop.f32.mrf.mxu0
  %v189 = vadd.f32 %v64, %v188
  %v190 = vpop.f32.mrf.mxu0
  %v191 = vadd.f32 %v60, %v190
  %v192 = vpop.f32.mrf.mxu0
  %v193 = vadd.f32 %v64, %v192
  %194 = vmatprep.mubr.bf16.mxu0 0
  %195 = vmatmul.mubr.bf16.gmra.mxu0 %v104
  %v196 = vpop.f32.mrf.mxu0
  %v197 = vadd.f32 %v60, %v196
  %v198 = vpop.f32.mrf.mxu0
  %v199 = vadd.f32 %v64, %v198
  %v200 = vpop.f32.mrf.mxu0
  %v201 = vadd.f32 %v60, %v200
  %v202 = vpop.f32.mrf.mxu0
  %v203 = vadd.f32 %v64, %v202
  %204 = vmatprep.mubr.bf16.mxu0 0
  %205 = vmatmul.mubr.bf16.gmra.mxu0 %v107
  %v206 = vpop.f32.mrf.mxu0
  %v207 = vadd.f32 %v60, %v206
  %v208 = vpop.f32.mrf.mxu0
  %v209 = vadd.f32 %v64, %v208
  %v210 = vpop.f32.mrf.mxu0
  %v211 = vadd.f32 %v60, %v210
  %v212 = vpop.f32.mrf.mxu0
  %v213 = vadd.f32 %v64, %v212
  %214 = vmatprep.mubr.bf16.mxu0 0
  %215 = vmatmul.mubr.bf16.gmra.mxu0 %v110
  %v216 = vpop.f32.mrf.mxu0
  %v217 = vadd.f32 %v60, %v216
  %v218 = vpop.f32.mrf.mxu0
  %v219 = vadd.f32 %v64, %v218
  %v220 = vpop.f32.mrf.mxu0
  %v221 = vadd.f32 %v60, %v220
  %v222 = vpop.f32.mrf.mxu0
  %v223 = vadd.f32 %v64, %v222
  %224 = vdwg.mxu0
  %v225 = vpack.c.bf16 %v151, %v147
  %v226 = vpack.c.bf16 %v153, %v149
  %v227 = vpack.c.bf16 %v161, %v157
  %v228 = vpack.c.bf16 %v163, %v159
  %v229 = vpack.c.bf16 %v171, %v167
  %v230 = vpack.c.bf16 %v173, %v169
  %v231 = vpack.c.bf16 %v181, %v177
  %v232 = vpack.c.bf16 %v183, %v179
  %v233 = vpack.c.bf16 %v191, %v187
  %v234 = vpack.c.bf16 %v193, %v189
  %v235 = vpack.c.bf16 %v201, %v197
  %v236 = vpack.c.bf16 %v203, %v199
  %v237 = vpack.c.bf16 %v211, %v207
  %v238 = vpack.c.bf16 %v213, %v209
  %v239 = vpack.c.bf16 %v221, %v217
  %v240 = vpack.c.bf16 %v223, %v219
  %v241 = vld [vmem:[%s3] sm:$0xff]
  %v242 = vld [vmem:[%s3 + $0x8] sm:$0xff]
  %v243 = vld [vmem:[%s3 + $0x10] sm:$0xff]
  %v244 = vld [vmem:[%s3 + $0x18] sm:$0xff]
  %v245 = vld [vmem:[%s3 + $0x20] sm:$0xff]
  %v246 = vld [vmem:[%s3 + $0x28] sm:$0xff]
  %v247 = vld [vmem:[%s3 + $0x30] sm:$0xff]
  %v248 = vld [vmem:[%s3 + $0x38] sm:$0xff]
  %v249 = vld [vmem:[%s3 + $0x40] sm:$0xff]
  %v250 = vld [vmem:[%s3 + $0x48] sm:$0xff]
  %v251 = vld [vmem:[%s3 + $0x50] sm:$0xff]
  %v252 = vld [vmem:[%s3 + $0x58] sm:$0xff]
  %v253 = vld [vmem:[%s3 + $0x60] sm:$0xff]
  %v254 = vld [vmem:[%s3 + $0x68] sm:$0xff]
  %v255 = vld [vmem:[%s3 + $0x70] sm:$0xff]
  %v256 = vld [vmem:[%s3 + $0x78] sm:$0xff]
  %v257 = vld [vmem:[%s3 + $0x80] sm:$0xff]
  %v258 = vld [vmem:[%s3 + $0x88] sm:$0xff]
  %v259 = vld [vmem:[%s3 + $0x90] sm:$0xff]
  %v260 = vld [vmem:[%s3 + $0x98] sm:$0xff]
  %v261 = vld [vmem:[%s3 + $0xa0] sm:$0xff]
  %v262 = vld [vmem:[%s3 + $0xa8] sm:$0xff]
  %v263 = vld [vmem:[%s3 + $0xb0] sm:$0xff]
  %v264 = vld [vmem:[%s3 + $0xb8] sm:$0xff]
  %v265 = vld [vmem:[%s3 + $0xc0] sm:$0xff]
  %v266 = vld [vmem:[%s3 + $0xc8] sm:$0xff]
  %v267 = vld [vmem:[%s3 + $0xd0] sm:$0xff]
  %v268 = vld [vmem:[%s3 + $0xd8] sm:$0xff]
  %v269 = vld [vmem:[%s3 + $0xe0] sm:$0xff]
  %v270 = vld [vmem:[%s3 + $0xe8] sm:$0xff]
  %v271 = vld [vmem:[%s3 + $0xf0] sm:$0xff]
  %v272 = vld [vmem:[%s3 + $0xf8] sm:$0xff]
  %v273 = vld [vmem:[%s4] sm:$0x3]
  %v275 = vlaneseq
  %v276 = vshrl.u32 %v275, 7
  %v277 = vsub.s32 0, %v276
  %v278 = vrot.slane %v273, %v277
  %v279 = vlaneseq
  %v280 = vshrl.u32 %v279, 7
  %v281 = vsub.s32 1, %v280
  %v282 = vrot.slane %v273, %v281
  %v317 = vunpack.c.l.b16 %v241
  %v318 = vunpack.c.h.b16 %v241
  %v319 = vunpack.c.l.b16 %v242
  %v320 = vunpack.c.h.b16 %v242
  %v321 = vunpack.c.l.b16 %v243
  %v322 = vunpack.c.h.b16 %v243
  %v323 = vunpack.c.l.b16 %v244
  %v324 = vunpack.c.h.b16 %v244
  %v325 = vunpack.c.l.b16 %v245
  %v326 = vunpack.c.h.b16 %v245
  %v327 = vunpack.c.l.b16 %v246
  %v328 = vunpack.c.h.b16 %v246
  %v329 = vunpack.c.l.b16 %v247
  %v330 = vunpack.c.h.b16 %v247
  %v331 = vunpack.c.l.b16 %v248
  %v332 = vunpack.c.h.b16 %v248
  %v333 = vunpack.c.l.b16 %v249
  %v334 = vunpack.c.h.b16 %v249
  %v335 = vunpack.c.l.b16 %v250
  %v336 = vunpack.c.h.b16 %v250
  %v337 = vunpack.c.l.b16 %v251
  %v338 = vunpack.c.h.b16 %v251
  %v339 = vunpack.c.l.b16 %v252
  %v340 = vunpack.c.h.b16 %v252
  %v341 = vunpack.c.l.b16 %v253
  %v342 = vunpack.c.h.b16 %v253
  %v343 = vunpack.c.l.b16 %v254
  %v344 = vunpack.c.h.b16 %v254
  %v345 = vunpack.c.l.b16 %v255
  %v346 = vunpack.c.h.b16 %v255
  %v347 = vunpack.c.l.b16 %v256
  %v348 = vunpack.c.h.b16 %v256
  %v349 = vunpack.c.l.b16 %v257
  %v350 = vunpack.c.h.b16 %v257
  %v351 = vunpack.c.l.b16 %v258
  %v352 = vunpack.c.h.b16 %v258
  %v353 = vunpack.c.l.b16 %v259
  %v354 = vunpack.c.h.b16 %v259
  %v355 = vunpack.c.l.b16 %v260
  %v356 = vunpack.c.h.b16 %v260
  %v357 = vunpack.c.l.b16 %v261
  %v358 = vunpack.c.h.b16 %v261
  %v359 = vunpack.c.l.b16 %v262
  %v360 = vunpack.c.h.b16 %v262
  %v361 = vunpack.c.l.b16 %v263
  %v362 = vunpack.c.h.b16 %v263
  %v363 = vunpack.c.l.b16 %v264
  %v364 = vunpack.c.h.b16 %v264
  %v365 = vunpack.c.l.b16 %v265
  %v366 = vunpack.c.h.b16 %v265
  %v367 = vunpack.c.l.b16 %v266
  %v368 = vunpack.c.h.b16 %v266
  %v369 = vunpack.c.l.b16 %v267
  %v370 = vunpack.c.h.b16 %v267
  %v371 = vunpack.c.l.b16 %v268
  %v372 = vunpack.c.h.b16 %v268
  %v373 = vunpack.c.l.b16 %v269
  %v374 = vunpack.c.h.b16 %v269
  %v375 = vunpack.c.l.b16 %v270
  %v376 = vunpack.c.h.b16 %v270
  %v377 = vunpack.c.l.b16 %v271
  %v378 = vunpack.c.h.b16 %v271
  %v379 = vunpack.c.l.b16 %v272
  %v380 = vunpack.c.h.b16 %v272
  %v381 = vpack.c.b16 %v319, %v317
  %v382 = vpack.c.b16 %v320, %v318
  %v383 = vpack.c.b16 %v323, %v321
  %v384 = vpack.c.b16 %v324, %v322
  %v385 = vpack.c.b16 %v327, %v325
  %v386 = vpack.c.b16 %v328, %v326
  %v387 = vpack.c.b16 %v331, %v329
  %v388 = vpack.c.b16 %v332, %v330
  %v389 = vpack.c.b16 %v335, %v333
  %v390 = vpack.c.b16 %v336, %v334
  %v391 = vpack.c.b16 %v339, %v337
  %v392 = vpack.c.b16 %v340, %v338
  %v393 = vpack.c.b16 %v343, %v341
  %v394 = vpack.c.b16 %v344, %v342
  %v395 = vpack.c.b16 %v347, %v345
  %v396 = vpack.c.b16 %v348, %v346
  %v397 = vpack.c.b16 %v351, %v349
  %v398 = vpack.c.b16 %v352, %v350
  %v399 = vpack.c.b16 %v355, %v353
  %v400 = vpack.c.b16 %v356, %v354
  %v401 = vpack.c.b16 %v359, %v357
  %v402 = vpack.c.b16 %v360, %v358
  %v403 = vpack.c.b16 %v363, %v361
  %v404 = vpack.c.b16 %v364, %v362
  %v405 = vpack.c.b16 %v367, %v365
  %v406 = vpack.c.b16 %v368, %v366
  %v407 = vpack.c.b16 %v371, %v369
  %v408 = vpack.c.b16 %v372, %v370
  %v409 = vpack.c.b16 %v375, %v373
  %v410 = vpack.c.b16 %v376, %v374
  %v411 = vpack.c.b16 %v379, %v377
  %v412 = vpack.c.b16 %v380, %v378
  %445 = vmatprep.subr.bf16.mxu0 %v396
  %446 = vmatpush1.bf16.msra.mxu0 %v395
  %447 = vmatprep.subr.bf16.mxu0 %v394
  %448 = vmatpush1.bf16.msra.mxu0 %v393
  %449 = vmatprep.subr.bf16.mxu0 %v392
  %450 = vmatpush1.bf16.msra.mxu0 %v391
  %451 = vmatprep.subr.bf16.mxu0 %v390
  %452 = vmatpush1.bf16.msra.mxu0 %v389
  %453 = vmatprep.subr.bf16.mxu0 %v388
  %454 = vmatpush1.bf16.msra.mxu0 %v387
  %455 = vmatprep.subr.bf16.mxu0 %v386
  %456 = vmatpush1.bf16.msra.mxu0 %v385
  %457 = vmatprep.subr.bf16.mxu0 %v384
  %458 = vmatpush1.bf16.msra.mxu0 %v383
  %459 = vmatprep.subr.bf16.mxu0 %v382
  %460 = vmatpush1.bf16.msra.mxu0 %v381
  %461 = vmatprep.subr.bf16.mxu0 %v412
  %462 = vmatpush2.bf16.msra.mxu0 %v411
  %463 = vmatprep.subr.bf16.mxu0 %v410
  %464 = vmatpush2.bf16.msra.mxu0 %v409
  %465 = vmatprep.subr.bf16.mxu0 %v408
  %466 = vmatpush2.bf16.msra.mxu0 %v407
  %467 = vmatprep.subr.bf16.mxu0 %v406
  %468 = vmatpush2.bf16.msra.mxu0 %v405
  %469 = vmatprep.subr.bf16.mxu0 %v404
  %470 = vmatpush2.bf16.msra.mxu0 %v403
  %471 = vmatprep.subr.bf16.mxu0 %v402
  %472 = vmatpush2.bf16.msra.mxu0 %v401
  %473 = vmatprep.subr.bf16.mxu0 %v400
  %474 = vmatpush2.bf16.msra.mxu0 %v399
  %475 = vmatprep.subr.bf16.mxu0 %v398
  %476 = vmatpush2.bf16.msra.mxu0 %v397
  %477 = vmatprep.mubr.bf16.mxu0 %v226
  %478 = vmatmul.mubr.bf16.gmra.mxu0 %v225
  %v479 = vpop.f32.mrf.mxu0
  %v480 = vadd.f32 %v278, %v479
  %v481 = vpop.f32.mrf.mxu0
  %v482 = vadd.f32 %v282, %v481
  %v483 = vpop.f32.mrf.mxu0
  %v484 = vadd.f32 %v278, %v483
  %v485 = vpop.f32.mrf.mxu0
  %v486 = vadd.f32 %v282, %v485
  %487 = vmatprep.mubr.bf16.mxu0 %v228
  %488 = vmatmul.mubr.bf16.gmra.mxu0 %v227
  %v489 = vpop.f32.mrf.mxu0
  %v490 = vadd.f32 %v278, %v489
  %v491 = vpop.f32.mrf.mxu0
  %v492 = vadd.f32 %v282, %v491
  %v493 = vpop.f32.mrf.mxu0
  %v494 = vadd.f32 %v278, %v493
  %v495 = vpop.f32.mrf.mxu0
  %v496 = vadd.f32 %v282, %v495
  %497 = vmatprep.mubr.bf16.mxu0 %v230
  %498 = vmatmul.mubr.bf16.gmra.mxu0 %v229
  %v499 = vpop.f32.mrf.mxu0
  %v500 = vadd.f32 %v278, %v499
  %v501 = vpop.f32.mrf.mxu0
  %v502 = vadd.f32 %v282, %v501
  %v503 = vpop.f32.mrf.mxu0
  %v504 = vadd.f32 %v278, %v503
  %v505 = vpop.f32.mrf.mxu0
  %v506 = vadd.f32 %v282, %v505
  %507 = vmatprep.mubr.bf16.mxu0 %v232
  %508 = vmatmul.mubr.bf16.gmra.mxu0 %v231
  %v509 = vpop.f32.mrf.mxu0
  %v510 = vadd.f32 %v278, %v509
  %v511 = vpop.f32.mrf.mxu0
  %v512 = vadd.f32 %v282, %v511
  %v513 = vpop.f32.mrf.mxu0
  %v514 = vadd.f32 %v278, %v513
  %v515 = vpop.f32.mrf.mxu0
  %v516 = vadd.f32 %v282, %v515
  %517 = vmatprep.mubr.bf16.mxu0 %v234
  %518 = vmatmul.mubr.bf16.gmra.mxu0 %v233
  %v519 = vpop.f32.mrf.mxu0
  %v520 = vadd.f32 %v278, %v519
  %v521 = vpop.f32.mrf.mxu0
  %v522 = vadd.f32 %v282, %v521
  %v523 = vpop.f32.mrf.mxu0
  %v524 = vadd.f32 %v278, %v523
  %v525 = vpop.f32.mrf.mxu0
  %v526 = vadd.f32 %v282, %v525
  %527 = vmatprep.mubr.bf16.mxu0 %v236
  %528 = vmatmul.mubr.bf16.gmra.mxu0 %v235
  %v529 = vpop.f32.mrf.mxu0
  %v530 = vadd.f32 %v278, %v529
  %v531 = vpop.f32.mrf.mxu0
  %v532 = vadd.f32 %v282, %v531
  %v533 = vpop.f32.mrf.mxu0
  %v534 = vadd.f32 %v278, %v533
  %v535 = vpop.f32.mrf.mxu0
  %v536 = vadd.f32 %v282, %v535
  %537 = vmatprep.mubr.bf16.mxu0 %v238
  %538 = vmatmul.mubr.bf16.gmra.mxu0 %v237
  %v539 = vpop.f32.mrf.mxu0
  %v540 = vadd.f32 %v278, %v539
  %v541 = vpop.f32.mrf.mxu0
  %v542 = vadd.f32 %v282, %v541
  %v543 = vpop.f32.mrf.mxu0
  %v544 = vadd.f32 %v278, %v543
  %v545 = vpop.f32.mrf.mxu0
  %v546 = vadd.f32 %v282, %v545
  %547 = vmatprep.mubr.bf16.mxu0 %v240
  %548 = vmatmul.mubr.bf16.gmra.mxu0 %v239
  %v549 = vpop.f32.mrf.mxu0
  %v550 = vadd.f32 %v278, %v549
  %v551 = vpop.f32.mrf.mxu0
  %v552 = vadd.f32 %v282, %v551
  %v553 = vpop.f32.mrf.mxu0
  %v554 = vadd.f32 %v278, %v553
  %v555 = vpop.f32.mrf.mxu0
  %v556 = vadd.f32 %v282, %v555
  %557 = vdwg.mxu0
  %v558 = vpack.c.bf16 %v484, %v480
  %v559 = vpack.c.bf16 %v486, %v482
  %v560 = vpack.c.bf16 %v494, %v490
  %v561 = vpack.c.bf16 %v496, %v492
  %v562 = vpack.c.bf16 %v504, %v500
  %v563 = vpack.c.bf16 %v506, %v502
  %v564 = vpack.c.bf16 %v514, %v510
  %v565 = vpack.c.bf16 %v516, %v512
  %v566 = vpack.c.bf16 %v524, %v520
  %v567 = vpack.c.bf16 %v526, %v522
  %v568 = vpack.c.bf16 %v534, %v530
  %v569 = vpack.c.bf16 %v536, %v532
  %v570 = vpack.c.bf16 %v544, %v540
  %v571 = vpack.c.bf16 %v546, %v542
  %v572 = vpack.c.bf16 %v554, %v550
  %v573 = vpack.c.bf16 %v556, %v552
  %v574 = vld [vmem:[%s5] sm:$0xf]
  %v575 = vld [vmem:[%s5 + $0x4] sm:$0xf]
  %v576 = vld [vmem:[%s5 + $0x8] sm:$0xf]
  %v577 = vld [vmem:[%s5 + $0xc] sm:$0xf]
  %v578 = vld [vmem:[%s5 + $0x10] sm:$0xf]
  %v579 = vld [vmem:[%s5 + $0x14] sm:$0xf]
  %v580 = vld [vmem:[%s5 + $0x18] sm:$0xf]
  %v581 = vld [vmem:[%s5 + $0x1c] sm:$0xf]
  %v582 = vld [vmem:[%s5 + $0x20] sm:$0xf]
  %v583 = vld [vmem:[%s5 + $0x24] sm:$0xf]
  %v584 = vld [vmem:[%s5 + $0x28] sm:$0xf]
  %v585 = vld [vmem:[%s5 + $0x2c] sm:$0xf]
  %v586 = vld [vmem:[%s5 + $0x30] sm:$0xf]
  %v587 = vld [vmem:[%s5 + $0x34] sm:$0xf]
  %v588 = vld [vmem:[%s5 + $0x38] sm:$0xf]
  %v589 = vld [vmem:[%s5 + $0x3c] sm:$0xf]
  %v590 = vld [vmem:[%s5 + $0x40] sm:$0xf]
  %v591 = vld [vmem:[%s5 + $0x44] sm:$0xf]
  %v592 = vld [vmem:[%s5 + $0x48] sm:$0xf]
  %v593 = vld [vmem:[%s5 + $0x4c] sm:$0xf]
  %v594 = vld [vmem:[%s5 + $0x50] sm:$0xf]
  %v595 = vld [vmem:[%s5 + $0x54] sm:$0xf]
  %v596 = vld [vmem:[%s5 + $0x58] sm:$0xf]
  %v597 = vld [vmem:[%s5 + $0x5c] sm:$0xf]
  %v598 = vld [vmem:[%s5 + $0x60] sm:$0xf]
  %v599 = vld [vmem:[%s5 + $0x64] sm:$0xf]
  %v600 = vld [vmem:[%s5 + $0x68] sm:$0xf]
  %v601 = vld [vmem:[%s5 + $0x6c] sm:$0xf]
  %v602 = vld [vmem:[%s5 + $0x70] sm:$0xf]
  %v603 = vld [vmem:[%s5 + $0x74] sm:$0xf]
  %v604 = vld [vmem:[%s5 + $0x78] sm:$0xf]
  %v605 = vld [vmem:[%s5 + $0x7c] sm:$0xf]
  %v606 = vld [vmem:[%s6] sm:$0x1]
  %v608 = vlaneseq
  %v609 = vshrl.u32 %v608, 7
  %v610 = vsub.s32 0, %v609
  %v611 = vrot.slane %v606, %v610
  %v645 = vunpack.c.l.b16 %v574
  %v646 = vunpack.c.l.b16 %v575
  %v647 = vunpack.c.l.b16 %v576
  %v648 = vunpack.c.l.b16 %v577
  %v649 = vunpack.c.l.b16 %v578
  %v650 = vunpack.c.l.b16 %v579
  %v651 = vunpack.c.l.b16 %v580
  %v652 = vunpack.c.l.b16 %v581
  %v653 = vunpack.c.l.b16 %v582
  %v654 = vunpack.c.l.b16 %v583
  %v655 = vunpack.c.l.b16 %v584
  %v656 = vunpack.c.l.b16 %v585
  %v657 = vunpack.c.l.b16 %v586
  %v658 = vunpack.c.l.b16 %v587
  %v659 = vunpack.c.l.b16 %v588
  %v660 = vunpack.c.l.b16 %v589
  %v661 = vunpack.c.l.b16 %v590
  %v662 = vunpack.c.l.b16 %v591
  %v663 = vunpack.c.l.b16 %v592
  %v664 = vunpack.c.l.b16 %v593
  %v665 = vunpack.c.l.b16 %v594
  %v666 = vunpack.c.l.b16 %v595
  %v667 = vunpack.c.l.b16 %v596
  %v668 = vunpack.c.l.b16 %v597
  %v669 = vunpack.c.l.b16 %v598
  %v670 = vunpack.c.l.b16 %v599
  %v671 = vunpack.c.l.b16 %v600
  %v672 = vunpack.c.l.b16 %v601
  %v673 = vunpack.c.l.b16 %v602
  %v674 = vunpack.c.l.b16 %v603
  %v675 = vunpack.c.l.b16 %v604
  %v676 = vunpack.c.l.b16 %v605
  %v677 = vpack.c.b16 %v646, %v645
  %v678 = vpack.c.b16 %v648, %v647
  %v679 = vpack.c.b16 %v650, %v649
  %v680 = vpack.c.b16 %v652, %v651
  %v681 = vpack.c.b16 %v654, %v653
  %v682 = vpack.c.b16 %v656, %v655
  %v683 = vpack.c.b16 %v658, %v657
  %v684 = vpack.c.b16 %v660, %v659
  %v685 = vpack.c.b16 %v662, %v661
  %v686 = vpack.c.b16 %v664, %v663
  %v687 = vpack.c.b16 %v666, %v665
  %v688 = vpack.c.b16 %v668, %v667
  %v689 = vpack.c.b16 %v670, %v669
  %v690 = vpack.c.b16 %v672, %v671
  %v691 = vpack.c.b16 %v674, %v673
  %v692 = vpack.c.b16 %v676, %v675
  %709 = vmatprep.subr.bf16.mxu0 0
  %710 = vmatpush1.bf16.msra.mxu0 %v684
  %711 = vmatprep.subr.bf16.mxu0 0
  %712 = vmatpush1.bf16.msra.mxu0 %v683
  %713 = vmatprep.subr.bf16.mxu0 0
  %714 = vmatpush1.bf16.msra.mxu0 %v682
  %715 = vmatprep.subr.bf16.mxu0 0
  %716 = vmatpush1.bf16.msra.mxu0 %v681
  %717 = vmatprep.subr.bf16.mxu0 0
  %718 = vmatpush1.bf16.msra.mxu0 %v680
  %719 = vmatprep.subr.bf16.mxu0 0
  %720 = vmatpush1.bf16.msra.mxu0 %v679
  %721 = vmatprep.subr.bf16.mxu0 0
  %722 = vmatpush1.bf16.msra.mxu0 %v678
  %723 = vmatprep.subr.bf16.mxu0 0
  %724 = vmatpush1.bf16.msra.mxu0 %v677
  %725 = vmatprep.subr.bf16.mxu0 0
  %726 = vmatpush2.bf16.msra.mxu0 %v692
  %727 = vmatprep.subr.bf16.mxu0 0
  %728 = vmatpush2.bf16.msra.mxu0 %v691
  %729 = vmatprep.subr.bf16.mxu0 0
  %730 = vmatpush2.bf16.msra.mxu0 %v690
  %731 = vmatprep.subr.bf16.mxu0 0
  %732 = vmatpush2.bf16.msra.mxu0 %v689
  %733 = vmatprep.subr.bf16.mxu0 0
  %734 = vmatpush2.bf16.msra.mxu0 %v688
  %735 = vmatprep.subr.bf16.mxu0 0
  %736 = vmatpush2.bf16.msra.mxu0 %v687
  %737 = vmatprep.subr.bf16.mxu0 0
  %738 = vmatpush2.bf16.msra.mxu0 %v686
  %739 = vmatprep.subr.bf16.mxu0 0
  %740 = vmatpush2.bf16.msra.mxu0 %v685
  %741 = vmatprep.mubr.bf16.mxu0 %v559
  %742 = vmatmul.mubr.bf16.gmra.mxu0 %v558
  %v743 = vpop.f32.mrf.mxu0
  %v744 = vadd.f32 %v611, %v743
  %v745 = vpop.f32.mrf.mxu0
  %v746 = vpop.f32.mrf.mxu0
  %v747 = vadd.f32 %v611, %v746
  %v748 = vpop.f32.mrf.mxu0
  %749 = vmatprep.mubr.bf16.mxu0 %v561
  %750 = vmatmul.mubr.bf16.gmra.mxu0 %v560
  %v751 = vpop.f32.mrf.mxu0
  %v752 = vadd.f32 %v611, %v751
  %v753 = vpop.f32.mrf.mxu0
  %v754 = vpop.f32.mrf.mxu0
  %v755 = vadd.f32 %v611, %v754
  %v756 = vpop.f32.mrf.mxu0
  %757 = vmatprep.mubr.bf16.mxu0 %v563
  %758 = vmatmul.mubr.bf16.gmra.mxu0 %v562
  %v759 = vpop.f32.mrf.mxu0
  %v760 = vadd.f32 %v611, %v759
  %v761 = vpop.f32.mrf.mxu0
  %v762 = vpop.f32.mrf.mxu0
  %v763 = vadd.f32 %v611, %v762
  %v764 = vpop.f32.mrf.mxu0
  %765 = vmatprep.mubr.bf16.mxu0 %v565
  %766 = vmatmul.mubr.bf16.gmra.mxu0 %v564
  %v767 = vpop.f32.mrf.mxu0
  %v768 = vadd.f32 %v611, %v767
  %v769 = vpop.f32.mrf.mxu0
  %v770 = vpop.f32.mrf.mxu0
  %v771 = vadd.f32 %v611, %v770
  %v772 = vpop.f32.mrf.mxu0
  %773 = vmatprep.mubr.bf16.mxu0 %v567
  %774 = vmatmul.mubr.bf16.gmra.mxu0 %v566
  %v775 = vpop.f32.mrf.mxu0
  %v776 = vadd.f32 %v611, %v775
  %v777 = vpop.f32.mrf.mxu0
  %v778 = vpop.f32.mrf.mxu0
  %v779 = vadd.f32 %v611, %v778
  %v780 = vpop.f32.mrf.mxu0
  %781 = vmatprep.mubr.bf16.mxu0 %v569
  %782 = vmatmul.mubr.bf16.gmra.mxu0 %v568
  %v783 = vpop.f32.mrf.mxu0
  %v784 = vadd.f32 %v611, %v783
  %v785 = vpop.f32.mrf.mxu0
  %v786 = vpop.f32.mrf.mxu0
  %v787 = vadd.f32 %v611, %v786
  %v788 = vpop.f32.mrf.mxu0
  %789 = vmatprep.mubr.bf16.mxu0 %v571
  %790 = vmatmul.mubr.bf16.gmra.mxu0 %v570
  %v791 = vpop.f32.mrf.mxu0
  %v792 = vadd.f32 %v611, %v791
  %v793 = vpop.f32.mrf.mxu0
  %v794 = vpop.f32.mrf.mxu0
  %v795 = vadd.f32 %v611, %v794
  %v796 = vpop.f32.mrf.mxu0
  %797 = vmatprep.mubr.bf16.mxu0 %v573
  %798 = vmatmul.mubr.bf16.gmra.mxu0 %v572
  %v799 = vpop.f32.mrf.mxu0
  %v800 = vadd.f32 %v611, %v799
  %v801 = vpop.f32.mrf.mxu0
  %v802 = vpop.f32.mrf.mxu0
  %v803 = vadd.f32 %v611, %v802
  %v804 = vpop.f32.mrf.mxu0
  %805 = vdwg.mxu0
  %806 = vst [vmem:[%s7] sm:$0xff] %v744
  %807 = vst [vmem:[%s7 + $0x8] sm:$0xff] %v747
  %808 = vst [vmem:[%s7 + $0x10] sm:$0xff] %v752
  %809 = vst [vmem:[%s7 + $0x18] sm:$0xff] %v755
  %810 = vst [vmem:[%s7 + $0x20] sm:$0xff] %v760
  %811 = vst [vmem:[%s7 + $0x28] sm:$0xff] %v763
  %812 = vst [vmem:[%s7 + $0x30] sm:$0xff] %v768
  %813 = vst [vmem:[%s7 + $0x38] sm:$0xff] %v771
  %814 = vst [vmem:[%s7 + $0x40] sm:$0xff] %v776
  %815 = vst [vmem:[%s7 + $0x48] sm:$0xff] %v779
  %816 = vst [vmem:[%s7 + $0x50] sm:$0xff] %v784
  %817 = vst [vmem:[%s7 + $0x58] sm:$0xff] %v787
  %818 = vst [vmem:[%s7 + $0x60] sm:$0xff] %v792
  %819 = vst [vmem:[%s7 + $0x68] sm:$0xff] %v795
  %820 = vst [vmem:[%s7 + $0x70] sm:$0xff] %v800
  %821 = vst [vmem:[%s7 + $0x78] sm:$0xff] %v803
  // Predicated region
  $region30: #{text_concatenate_forward.1} parent=0 // pred_check
    _
  $region31: #{text_concatenate_forward.1} parent=0 // pred_check_branch
    %823 = sbr.rel (0) target = $region33
  $region32: #{text_concatenate_forward.1} parent=0 // pred_region
    _
  $region33: #{text_concatenate_forward.1} parent=0 // pred_fallthru
    _
  // Predicated region
  $region34: #{text_concatenate_forward.1} parent=0 // pred_check
    _
  $region35: #{text_concatenate_forward.1} parent=0 // pred_check_branch
    %825 = sbr.rel (0) target = $region37
  $region36: #{text_concatenate_forward.1} parent=0 // pred_region
    _
  $region37: #{text_concatenate_forward.1} parent=0 // pred_fallthru
    _

</llo_original>
